<compile_context>
chip_gen: v7x
topology: tpu7x:2x2x1
jax: 0.10.0
libtpu: 0.0.40
codegen_flags: <defaults>
</compile_context>

<pallas_src>
import functools

import numpy as np
import jax
import jax.numpy as jnp
from jax.experimental import pallas as pl
from jax.experimental.pallas import tpu as pltpu


# -----------------------------------------------------------------------------
# Tiling helpers
# -----------------------------------------------------------------------------
_ROW_TILE_MM = 256        # token rows per matmul grid step (multiple of 8)
_ROW_TILE_TGT = 512       # token rows per target-kernel grid step (mem-bound)
_COL_TILE = 512           # output-feature tile (multiple of 128 when tiled)
_VMEM_LIMIT = 64 * 1024 * 1024   # <= v7x physical VMEM; >> default scoped limit


def _mosaic_params(sem):
    return pltpu.CompilerParams(dimension_semantics=sem,
                                vmem_limit_bytes=_VMEM_LIMIT)


def _tile_rows(n, target):
    """Pick a row tile and a padded row count such that padded % tile == 0."""
    if n > target:
        padded = -(-n // target) * target
        return target, padded
    # n <= target: use the whole (full-dim) block; allowed even if n % 8 != 0.
    return n, n


def _tile_cols(d, target=_COL_TILE):
    """Output-feature tile: a multiple of 128 that divides d, else full d."""
    if d <= target:
        return d
    t = (target // 128) * 128
    while t >= 128:
        if d % t == 0:
            return t
        t -= 128
    return d


def _pad_rows(x, padded_n):
    n = x.shape[0]
    if padded_n == n:
        return x
    return jnp.pad(x, ((0, padded_n - n), (0, 0)))


# -----------------------------------------------------------------------------
# Pallas kernels
# -----------------------------------------------------------------------------
def _ln_linear_gelu_kernel(h_ref, g_ref, beta_ref, w_ref, b_ref, o_ref, *, eps):
    """o = gelu(LayerNorm(h) @ w + b) for one (token-tile, Dout-tile) block.

    Pre-LN prologue + GELU epilogue fused into the MXU matmul: LN stats / GELU
    run on the VPU/EUP slots that are otherwise idle while the MXU streams.
    """
    h = h_ref[...].astype(jnp.float32)                               # [tn, D]
    mu = jnp.mean(h, axis=-1, keepdims=True)
    var = jnp.mean(jnp.square(h - mu), axis=-1, keepdims=True)
    hn = (h - mu) * jax.lax.rsqrt(var + eps) * g_ref[...] + beta_ref[...]
    acc = jnp.dot(hn.astype(jnp.bfloat16), w_ref[...],
                  preferred_element_type=jnp.float32)                # [tn, tj]
    acc = acc + b_ref[...]
    o_ref[...] = jax.nn.gelu(acc, approximate=True).astype(o_ref.dtype)


def _linear_residual_kernel(u_ref, w_ref, b_ref, r_ref, o_ref):
    """o = r + (u @ w + b): down-projection with fused bias + residual add."""
    acc = jnp.dot(u_ref[...], w_ref[...], preferred_element_type=jnp.float32)
    acc = acc + b_ref[...] + r_ref[...].astype(jnp.float32)
    o_ref[...] = acc.astype(o_ref.dtype)


def _linear_kernel(x_ref, w_ref, b_ref, o_ref):
    """o = x @ w + b (regression head)."""
    acc = jnp.dot(x_ref[...], w_ref[...], preferred_element_type=jnp.float32)
    o_ref[...] = (acc + b_ref[...]).astype(o_ref.dtype)


def _target_kernel(*refs, k, normalize_targets, eps=1e-5):
    """data2vec target for one token tile.

    refs[:k] : K bf16 [tm, D] tiles of the top-K teacher hidden states
    refs[k]  : f32  [tm, D] output tile
    y = mean_k(LayerNorm(h_k)) (affine-free), optionally LayerNorm'd again.
    """
    y_ref = refs[k]
    acc = jnp.zeros(y_ref.shape, jnp.float32)
    for hr in refs[:k]:
        h = hr[...].astype(jnp.float32)
        mu = jnp.mean(h, axis=-1, keepdims=True)
        var = jnp.mean(jnp.square(h - mu), axis=-1, keepdims=True)
        acc = acc + (h - mu) * jax.lax.rsqrt(var + eps)
    y = acc * (1.0 / k)
    if normalize_targets:
        mu2 = jnp.mean(y, axis=-1, keepdims=True)
        var2 = jnp.mean(jnp.square(y - mu2), axis=-1, keepdims=True)
        y = (y - mu2) * jax.lax.rsqrt(var2 + eps)
    y_ref[...] = y.astype(y_ref.dtype)


# -----------------------------------------------------------------------------
# Pallas wrappers
# -----------------------------------------------------------------------------
def pallas_ln_linear_gelu(x, ln_g, ln_b, w, b):
    """x: [N, D] bf16, w: [D, H] bf16 -> gelu(LN(x) @ w + b): [N, H] bf16."""
    n, d_in = x.shape
    d_out = w.shape[1]
    tn, n_pad = _tile_rows(n, _ROW_TILE_MM)
    tj = _tile_cols(d_out)
    xp = _pad_rows(x, n_pad)
    g2 = ln_g.reshape(1, d_in).astype(jnp.float32)
    be2 = ln_b.reshape(1, d_in).astype(jnp.float32)
    b2 = b.reshape(1, d_out).astype(jnp.float32)
    out = pl.pallas_call(
        functools.partial(_ln_linear_gelu_kernel, eps=1e-5),
        out_shape=jax.ShapeDtypeStruct((n_pad, d_out), jnp.bfloat16),
        grid=(n_pad // tn, d_out // tj),
        in_specs=[
            pl.BlockSpec((tn, d_in), lambda i, j: (i, 0)),
            pl.BlockSpec((1, d_in), lambda i, j: (0, 0)),
            pl.BlockSpec((1, d_in), lambda i, j: (0, 0)),
            pl.BlockSpec((d_in, tj), lambda i, j: (0, j)),
            pl.BlockSpec((1, tj), lambda i, j: (0, j)),
        ],
        out_specs=pl.BlockSpec((tn, tj), lambda i, j: (i, j)),
        compiler_params=_mosaic_params(("parallel", "parallel")),
    )(xp, g2, be2, w, b2)
    return out[:n] if n_pad != n else out


def pallas_linear_residual(u, w, b, resid):
    """u: [N, H] bf16, w: [H, D] bf16, resid: [N, D] bf16 -> resid + u@w + b."""
    n, d_in = u.shape
    d_out = w.shape[1]
    tn, n_pad = _tile_rows(n, _ROW_TILE_MM)
    tj = _tile_cols(d_out)
    up = _pad_rows(u, n_pad)
    rp = _pad_rows(resid, n_pad)
    b2 = b.reshape(1, d_out).astype(jnp.float32)
    # TODO(synk): for very large H (>8k) add a third "arbitrary" reduction grid
    # axis with a VMEM f32 accumulator (pattern P3) to bound the LHS block.
    out = pl.pallas_call(
        _linear_residual_kernel,
        out_shape=jax.ShapeDtypeStruct((n_pad, d_out), jnp.bfloat16),
        grid=(n_pad // tn, d_out // tj),
        in_specs=[
            pl.BlockSpec((tn, d_in), lambda i, j: (i, 0)),
            pl.BlockSpec((d_in, tj), lambda i, j: (0, j)),
            pl.BlockSpec((1, tj), lambda i, j: (0, j)),
            pl.BlockSpec((tn, tj), lambda i, j: (i, j)),
        ],
        out_specs=pl.BlockSpec((tn, tj), lambda i, j: (i, j)),
        compiler_params=_mosaic_params(("parallel", "parallel")),
    )(up, w, b2, rp)
    return out[:n] if n_pad != n else out


def pallas_linear(x, w, b, out_dtype=jnp.float32):
    """x: [N, Din] bf16, w: [Din, Dout] bf16 -> [N, Dout] (regression head)."""
    n, d_in = x.shape
    d_out = w.shape[1]
    tn, n_pad = _tile_rows(n, _ROW_TILE_MM)
    tj = _tile_cols(d_out)
    xp = _pad_rows(x, n_pad)
    b2 = b.reshape(1, d_out).astype(jnp.float32)
    out = pl.pallas_call(
        _linear_kernel,
        out_shape=jax.ShapeDtypeStruct((n_pad, d_out), out_dtype),
        grid=(n_pad // tn, d_out // tj),
        in_specs=[
            pl.BlockSpec((tn, d_in), lambda i, j: (i, 0)),
            pl.BlockSpec((d_in, tj), lambda i, j: (0, j)),
            pl.BlockSpec((1, tj), lambda i, j: (0, j)),
        ],
        out_specs=pl.BlockSpec((tn, tj), lambda i, j: (i, j)),
        compiler_params=_mosaic_params(("parallel", "parallel")),
    )(xp, w, b2)
    return out[:n] if n_pad != n else out


def pallas_data2vec_target(hs_list, normalize_targets):
    """hs_list: K bf16 arrays [M, D] (top-K teacher hidden states) -> f32 [M, D]."""
    k = len(hs_list)
    m, d = hs_list[0].shape
    tm, m_pad = _tile_rows(m, _ROW_TILE_TGT)
    hs_list = [_pad_rows(h, m_pad) for h in hs_list]
    kern = functools.partial(_target_kernel, k=k,
                             normalize_targets=normalize_targets)
    out = pl.pallas_call(
        kern,
        out_shape=jax.ShapeDtypeStruct((m_pad, d), jnp.float32),
        grid=(m_pad // tm,),
        in_specs=[pl.BlockSpec((tm, d), lambda i: (i, 0)) for _ in range(k)],
        out_specs=pl.BlockSpec((tm, d), lambda i: (i, 0)),
        compiler_params=_mosaic_params(("parallel",)),
    )(*hs_list)
    return out[:m] if m_pad != m else out


# -----------------------------------------------------------------------------
# Plain-JAX glue: stand-in transformer encoder + parameter init
# -----------------------------------------------------------------------------
def _layer_norm(x, gamma, beta, eps=1e-5):
    mu = jnp.mean(x, axis=-1, keepdims=True)
    var = jnp.mean(jnp.square(x - mu), axis=-1, keepdims=True)
    return (x - mu) * jax.lax.rsqrt(var + eps) * gamma + beta


def encoder_forward(enc_params, tokens, mask=None):
    """Deterministic pre-LN MLP-block encoder stand-in (ctor-injected in torch).

    tokens: [B, S, D] f32.  Returns (encoder_out, list of per-layer hidden states
    as bf16 [B, S, D]).  Residual stream is bf16; LN/accumulation in f32 inside
    the fused Pallas kernels.
    """
    b, s, d = tokens.shape
    h = tokens
    if mask is not None:
        h = jnp.where(mask[..., None], enc_params["mask_token"][None, None, :], h)
    h = h.astype(jnp.bfloat16).reshape(b * s, d)
    hidden_states = []
    for layer in enc_params["layers"]:
        # fused: pre-LN + up-proj (D->H) + GELU  (one Pallas kernel)
        up = pallas_ln_linear_gelu(h, layer["ln_g"], layer["ln_b"],
                                   layer["w1"], layer["b1"])
        # fused: down-proj (H->D) + bias + residual add  (one Pallas kernel)
        h = pallas_linear_residual(up, layer["w2"], layer["b2"], h)
        hidden_states.append(h.reshape(b, s, d))
    encoder_out = _layer_norm(h.reshape(b, s, d).astype(jnp.float32),
                              enc_params["final_g"], enc_params["final_b"])
    return encoder_out, hidden_states


def init_params(key, d, hidden, n_layers):
    keys = jax.random.split(key, 2 * n_layers + 3)
    layers = []
    for li in range(n_layers):
        k1, k2 = keys[2 * li], keys[2 * li + 1]
        layers.append(dict(
            ln_g=jnp.ones((d,), jnp.float32),
            ln_b=jnp.zeros((d,), jnp.float32),
            w1=(0.02 * jax.random.normal(k1, (d, hidden), jnp.float32)
                ).astype(jnp.bfloat16),
            b1=jnp.zeros((hidden,), jnp.float32),
            w2=(0.02 * jax.random.normal(k2, (hidden, d), jnp.float32)
                ).astype(jnp.bfloat16),
            b2=jnp.zeros((d,), jnp.float32),
        ))
    encoder = dict(
        layers=layers,
        mask_token=0.02 * jax.random.normal(keys[-3], (d,), jnp.float32),
        final_g=jnp.ones((d,), jnp.float32),
        final_b=jnp.zeros((d,), jnp.float32),
    )
    # EMA teacher at step 0 is an exact parameter copy of the student encoder.
    ema_encoder = jax.tree_util.tree_map(lambda p: p, encoder)
    head_w = (0.02 * jax.random.normal(keys[-2], (d, d), jnp.float32)
              ).astype(jnp.bfloat16)                                 # [in, out]
    head_b = jnp.zeros((d,), jnp.float32)
    return dict(encoder=encoder, ema_encoder=ema_encoder,
                head_w=head_w, head_b=head_b)


# -----------------------------------------------------------------------------
# SSTransformer forward (Pallas version)
# -----------------------------------------------------------------------------
class SSTransformerPallas:
    def __init__(self, params, embed_dim, average_top_k_layers, normalize_targets):
        self.params = params
        self.embed_dim = embed_dim
        self.average_top_k_layers = average_top_k_layers
        self.normalize_targets = normalize_targets

    # TODO(synk): ema_step() (EMA decay annealing / parameter-copy bookkeeping)
    # is training-loop state mutation, not part of the forward hot path; omitted.

    def __call__(self, student_input, teacher_input=None, mask=None, mask_np=None):
        p = self.params
        encoder_out, student_hs = encoder_forward(p["encoder"], student_input,
                                                  mask=mask)
        if teacher_input is None:
            return encoder_out

        b, s, d = student_input.shape
        x = student_hs[-1]                                           # [B,S,D] bf16

        # teacher path (torch.no_grad -> stop_gradient); no jnp.stack: the K
        # bf16 hidden states feed the target kernel directly.
        _, teacher_hs = encoder_forward(p["ema_encoder"], teacher_input, mask=None)
        top_k = [t.reshape(b * s, d) for t in
                 teacher_hs[-self.average_top_k_layers:]]
        y = pallas_data2vec_target(top_k, self.normalize_targets)    # [B*S, D] f32
        y = jax.lax.stop_gradient(y)

        # boolean-mask selection (static indices, row-major == torch x[mask])
        idx = jnp.asarray(np.nonzero(np.asarray(mask_np).reshape(-1))[0])
        x_m = jnp.take(x.reshape(b * s, d), idx, axis=0)             # [Nmask, D]
        y_m = jnp.take(y, idx, axis=0)                               # [Nmask, D]

        # regression head (Pallas matmul kernel, bf16 in / f32 out)
        x_out = pallas_linear(x_m, p["head_w"], p["head_b"], out_dtype=jnp.float32)
        return x_out, y_m


# -----------------------------------------------------------------------------
# Demo
# -----------------------------------------------------------------------------
if __name__ == "__main__":
    B, S, D, HID, L, K_TOP = 2, 8, 32, 64, 4, 3

    key = jax.random.PRNGKey(0)
    k_in, k_p = jax.random.split(key)

    student_input = jax.random.normal(k_in, (B, S, D), jnp.float32)
    teacher_input = student_input                  # teacher sees the unmasked input

    mask_np = np.zeros((B, S), dtype=bool)
    mask_np[:, ::2] = True                         # deterministic mask, 8 tokens
    mask = jnp.asarray(mask_np)

    params = init_params(k_p, D, HID, L)
    model = SSTransformerPallas(params, embed_dim=D,
                                average_top_k_layers=K_TOP,
                                normalize_targets=True)

    x_pred, y_tgt = model(student_input, teacher_input, mask=mask, mask_np=mask_np)
    jax.block_until_ready((x_pred, y_tgt))

    n_mask = int(mask_np.sum())
    assert x_pred.shape == (n_mask, D), x_pred.shape
    assert y_tgt.shape == (n_mask, D), y_tgt.shape
    assert bool(jnp.all(jnp.isfinite(x_pred))) and bool(jnp.all(jnp.isfinite(y_tgt)))
    print("KERNEL_OK")
</pallas_src>

<mosaic_0001>
module attributes {stable_mosaic.version = 11 : i64} {
  func.func @_ln_linear_gelu_kernel(%arg0: i32, %arg1: i32, %arg2: memref<16x32xbf16, #tpu.memory_space<vmem>>, %arg3: memref<1x32xf32, #tpu.memory_space<vmem>>, %arg4: memref<1x32xf32, #tpu.memory_space<vmem>>, %arg5: memref<32x64xbf16, #tpu.memory_space<vmem>>, %arg6: memref<1x64xf32, #tpu.memory_space<vmem>>, %arg7: memref<16x64xbf16, #tpu.memory_space<vmem>>) attributes {dimension_semantics = [#tpu.dimension_semantics<parallel>, #tpu.dimension_semantics<parallel>], iteration_bounds = array<i64: 1, 1>, scalar_prefetch = 0 : i64, scratch_operands = 0 : i64, tpu.core_type = #tpu.core_type<tc>, window_params = [{transform_indices = @transform_0, window_bounds = array<i64: 16, 32>}, {pipeline_mode = #tpu.pipeline_mode<synchronous>, transform_indices = @transform_1, window_bounds = array<i64: 1, 32>}, {pipeline_mode = #tpu.pipeline_mode<synchronous>, transform_indices = @transform_2, window_bounds = array<i64: 1, 32>}, {transform_indices = @transform_3, window_bounds = array<i64: 32, 64>}, {transform_indices = @transform_4, window_bounds = array<i64: 1, 64>}, {transform_indices = @transform_5, window_bounds = array<i64: 16, 64>}]} {
    %c0 = arith.constant 0 : index
    %c0_0 = arith.constant 0 : index
    %0 = vector.load %arg2[%c0, %c0_0] : memref<16x32xbf16, #tpu.memory_space<vmem>>, vector<16x32xbf16>
    %1 = arith.extf %0 : vector<16x32xbf16> to vector<16x32xf32>
    %cst = arith.constant dense<0.000000e+00> : vector<16xf32>
    %2 = vector.multi_reduction <add>, %1, %cst [1] : vector<16x32xf32> to vector<16xf32>
    %3 = vector.shape_cast %2 : vector<16xf32> to vector<16x1xf32>
    %cst_1 = arith.constant 3.200000e+01 : f32
    %4 = vector.broadcast %cst_1 : f32 to vector<16x1xf32>
    %5 = arith.divf %3, %4 : vector<16x1xf32>
    %6 = vector.broadcast %5 : vector<16x1xf32> to vector<16x32xf32>
    %7 = arith.subf %1, %6 : vector<16x32xf32>
    %8 = arith.mulf %7, %7 : vector<16x32xf32>
    %cst_2 = arith.constant dense<0.000000e+00> : vector<16xf32>
    %9 = vector.multi_reduction <add>, %8, %cst_2 [1] : vector<16x32xf32> to vector<16xf32>
    %10 = vector.shape_cast %9 : vector<16xf32> to vector<16x1xf32>
    %cst_3 = arith.constant 3.200000e+01 : f32
    %11 = vector.broadcast %cst_3 : f32 to vector<16x1xf32>
    %12 = arith.divf %10, %11 : vector<16x1xf32>
    %13 = vector.broadcast %5 : vector<16x1xf32> to vector<16x32xf32>
    %14 = arith.subf %1, %13 : vector<16x32xf32>
    %cst_4 = arith.constant 9.99999974E-6 : f32
    %15 = vector.broadcast %cst_4 : f32 to vector<16x1xf32>
    %16 = arith.addf %12, %15 : vector<16x1xf32>
    %17 = math.rsqrt %16 : vector<16x1xf32>
    %18 = vector.broadcast %17 : vector<16x1xf32> to vector<16x32xf32>
    %19 = arith.mulf %14, %18 : vector<16x32xf32>
    %c0_5 = arith.constant 0 : index
    %c0_6 = arith.constant 0 : index
    %20 = vector.load %arg3[%c0_5, %c0_6] : memref<1x32xf32, #tpu.memory_space<vmem>>, vector<1x32xf32>
    %21 = vector.broadcast %20 : vector<1x32xf32> to vector<16x32xf32>
    %22 = arith.mulf %19, %21 : vector<16x32xf32>
    %c0_7 = arith.constant 0 : index
    %c0_8 = arith.constant 0 : index
    %23 = vector.load %arg4[%c0_7, %c0_8] : memref<1x32xf32, #tpu.memory_space<vmem>>, vector<1x32xf32>
    %24 = vector.broadcast %23 : vector<1x32xf32> to vector<16x32xf32>
    %25 = arith.addf %22, %24 : vector<16x32xf32>
    %26 = arith.truncf %25 : vector<16x32xf32> to vector<16x32xbf16>
    %c0_9 = arith.constant 0 : index
    %c0_10 = arith.constant 0 : index
    %27 = vector.load %arg5[%c0_9, %c0_10] : memref<32x64xbf16, #tpu.memory_space<vmem>>, vector<32x64xbf16>
    %cst_11 = arith.constant dense<0.000000e+00> : vector<16x64xf32>
    %28 = tpu.matmul %26, %27, %cst_11 {dimension_numbers = #tpu.dot_dimension_numbers<[1], [0], [0], [1], [0, 0, 1, 1], [], []>} : vector<16x32xbf16>, vector<32x64xbf16>, vector<16x64xf32> -> vector<16x64xf32>
    %c0_12 = arith.constant 0 : index
    %c0_13 = arith.constant 0 : index
    %29 = vector.load %arg6[%c0_12, %c0_13] : memref<1x64xf32, #tpu.memory_space<vmem>>, vector<1x64xf32>
    %30 = vector.broadcast %29 : vector<1x64xf32> to vector<16x64xf32>
    %31 = arith.addf %28, %30 : vector<16x64xf32>
    %32 = arith.mulf %31, %31 : vector<16x64xf32>
    %33 = arith.mulf %31, %32 : vector<16x64xf32>
    %cst_14 = arith.constant 4.471500e-02 : f32
    %34 = vector.broadcast %cst_14 : f32 to vector<16x64xf32>
    %35 = arith.mulf %34, %33 : vector<16x64xf32>
    %36 = arith.addf %31, %35 : vector<16x64xf32>
    %cst_15 = arith.constant 0.797884583 : f32
    %37 = vector.broadcast %cst_15 : f32 to vector<16x64xf32>
    %38 = arith.mulf %37, %36 : vector<16x64xf32>
    %39 = math.tanh %38 : vector<16x64xf32>
    %cst_16 = arith.constant 1.000000e+00 : f32
    %40 = vector.broadcast %cst_16 : f32 to vector<16x64xf32>
    %41 = arith.addf %40, %39 : vector<16x64xf32>
    %cst_17 = arith.constant 5.000000e-01 : f32
    %42 = vector.broadcast %cst_17 : f32 to vector<16x64xf32>
    %43 = arith.mulf %42, %41 : vector<16x64xf32>
    %44 = arith.mulf %31, %43 : vector<16x64xf32>
    %45 = arith.truncf %44 : vector<16x64xf32> to vector<16x64xbf16>
    %c0_18 = arith.constant 0 : index
    %c0_19 = arith.constant 0 : index
    %46 = vector.load %arg7[%c0_18, %c0_19] : memref<16x64xbf16, #tpu.memory_space<vmem>>, vector<16x64xbf16>
    tpu.vector_store %arg7[%c0_18, %c0_19], %45 {strides = array<i32>} : memref<16x64xbf16, #tpu.memory_space<vmem>>, vector<16x64xbf16>,
    return
  }
  func.func @transform_0(%arg0: i32, %arg1: i32) -> (i32, i32) {
    %c0_i32 = arith.constant 0 : i32
    %c0_i32_0 = arith.constant 0 : i32
    return %arg0, %c0_i32 : i32, i32
  }
  func.func @transform_1(%arg0: i32, %arg1: i32) -> (i32, i32) {
    %c0_i32 = arith.constant 0 : i32
    %c0_i32_0 = arith.constant 0 : i32
    %c0_i32_1 = arith.constant 0 : i32
    return %c0_i32, %c0_i32_0 : i32, i32
  }
  func.func @transform_2(%arg0: i32, %arg1: i32) -> (i32, i32) {
    %c0_i32 = arith.constant 0 : i32
    %c0_i32_0 = arith.constant 0 : i32
    %c0_i32_1 = arith.constant 0 : i32
    return %c0_i32, %c0_i32_0 : i32, i32
  }
  func.func @transform_3(%arg0: i32, %arg1: i32) -> (i32, i32) {
    %c0_i32 = arith.constant 0 : i32
    %c0_i32_0 = arith.constant 0 : i32
    return %c0_i32, %arg1 : i32, i32
  }
  func.func @transform_4(%arg0: i32, %arg1: i32) -> (i32, i32) {
    %c0_i32 = arith.constant 0 : i32
    %c0_i32_0 = arith.constant 0 : i32
    return %c0_i32, %arg1 : i32, i32
  }
  func.func @transform_5(%arg0: i32, %arg1: i32) -> (i32, i32) {
    %c0_i32 = arith.constant 0 : i32
    return %arg0, %arg1 : i32, i32
  }
}

</mosaic_0001>

<llo_original>
// kernel: tpu_custom_call.1
$region0: #{tpu_custom_call.1}
  #allocation0 [shape = 'u32[]', space=smem, size = 0x4, offset = 0x4, fixed_abs, tag = 'smem constant byte address 0x4 - core index']
  #allocation1 [shape = 'u32[144,128]{1,0:T(1,128)}', space=vmem, size = 0x12000, scoped, tag = 'internal scratch']
  %s0 = inlined_call_operand.hbm [shape: bf16[16,32], index: 0, kind: input, shape index: {}]
  %s1 = inlined_call_operand.hbm [shape: f32[1,32], index: 1, kind: input, shape index: {}]
  %s2 = inlined_call_operand.hbm [shape: f32[1,32], index: 2, kind: input, shape index: {}]
  %s3 = inlined_call_operand.hbm [shape: bf16[32,64], index: 3, kind: input, shape index: {}]
  %s4 = inlined_call_operand.hbm [shape: f32[1,64], index: 4, kind: input, shape index: {}]
  %s5 = inlined_call_operand.hbm [shape: bf16[16,64], index: 5, kind: output, shape index: {}]
  %s6 = sld [smem:[#allocation0]]
  $region50: #{tpu_custom_call.1} parent=0
    _
  %s8 = ssub.s32 1, %s6
  %s9 = scalar_select 0, %s8, %s6
  $region1: #{tpu_custom_call.1} parent=0
    #allocation2 [shape = 'u8[4096]{0}', space=vmem, size = 0x1000, scoped, tag = 'input window, operand 0, single buffered']
    #allocation3 [shape = 's32[1]{0}', space=sflag, size = 0x4, scoped, tag = 'scoped memory for tpu_custom_call.1']
    #allocation4 [shape = 's32[1]{0}', space=sflag, size = 0x4, scoped, tag = 'scoped memory for tpu_custom_call.1']
    #allocation5 [shape = 'u8[512]{0}', space=vmem, size = 0x400, scoped, tag = 'input window, operand 1, single buffered']
    #allocation6 [shape = 's32[1]{0}', space=sflag, size = 0x4, scoped, tag = 'scoped memory for tpu_custom_call.1']
    #allocation7 [shape = 'u8[512]{0}', space=vmem, size = 0x400, scoped, tag = 'input window, operand 2, single buffered']
    #allocation8 [shape = 'u8[8192]{0}', space=vmem, size = 0x2000, scoped, tag = 'input window, operand 3, single buffered']
    #allocation9 [shape = 's32[1]{0}', space=sflag, size = 0x4, scoped, tag = 'scoped memory for tpu_custom_call.1']
    #allocation10 [shape = 'u8[512]{0}', space=vmem, size = 0x400, scoped, tag = 'input window, operand 4, single buffered']
    #allocation11 [shape = 'u8[4096]{0}', space=vmem, size = 0x1000, scoped, tag = 'output window, operand 0, single buffered']
    %10 = vsyncpa [#allocation3], 0
    %11 = vsyncpa [#allocation6], 0
    %12 = vsyncpa [#allocation9], 0
    %13 = vsyncpa [#allocation4], 0
    // Predicated region
    $region2: #{tpu_custom_call.1} parent=1 // pred_check
      _
    $region3: #{tpu_custom_call.1} parent=1 // pred_check_branch
      %15 = sbr.rel (0) target = $region5
    $region4: #{tpu_custom_call.1} parent=1 // pred_region
      %s17 = ssub.s32 128, 128
      %18 = vsyncadd [#allocation3], %s17
      %s19 = sshll.u32 [#allocation2], 4
      %s20 = int_to_ptr.vmem [resolvable:$true] %s19
      %25 = dma.hbm_to_vmem [thread:$0]  %s0, 128, %s20, [#allocation3], 64, 64, 4
    $region5: #{tpu_custom_call.1} parent=1 // pred_fallthru
      _
    // Predicated region
    $region6: #{tpu_custom_call.1} parent=1 // pred_check
      _
    $region7: #{tpu_custom_call.1} parent=1 // pred_check_branch
      %27 = sbr.rel (0) target = $region9
    $region8: #{tpu_custom_call.1} parent=1 // pred_region
      %s29 = ssub.s32 16, 16
      %30 = vsyncadd [#allocation6], %s29
      %s32 = sshll.u32 [#allocation5], 4
      %s33 = int_to_ptr.vmem [resolvable:$true] %s32
      %35 = dma.hbm_to_vmem [thread:$0]  %s1, 16, %s33, [#allocation6]
    $region9: #{tpu_custom_call.1} parent=1 // pred_fallthru
      _
    // Predicated region
    $region10: #{tpu_custom_call.1} parent=1 // pred_check
      _
    $region11: #{tpu_custom_call.1} parent=1 // pred_check_branch
      %37 = sbr.rel (0) target = $region13
    $region12: #{tpu_custom_call.1} parent=1 // pred_region
      %s39 = ssub.s32 16, 16
      %40 = vsyncadd [#allocation6], %s39
      %s42 = sshll.u32 [#allocation7], 4
      %s43 = int_to_ptr.vmem [resolvable:$true] %s42
      %45 = dma.hbm_to_vmem [thread:$0]  %s2, 16, %s43, [#allocation6]
    $region13: #{tpu_custom_call.1} parent=1 // pred_fallthru
      _
    // Predicated region
    $region14: #{tpu_custom_call.1} parent=1 // pred_check
      _
    $region15: #{tpu_custom_call.1} parent=1 // pred_check_branch
      %47 = sbr.rel (0) target = $region17
    $region16: #{tpu_custom_call.1} parent=1 // pred_region
      %s49 = ssub.s32 256, 256
      %50 = vsyncadd [#allocation9], %s49
      %s51 = sshll.u32 [#allocation8], 4
      %s52 = int_to_ptr.vmem [resolvable:$true] %s51
      %57 = dma.hbm_to_vmem [thread:$0]  %s3, 256, %s52, [#allocation9], 64, 64, 4
    $region17: #{tpu_custom_call.1} parent=1 // pred_fallthru
      _
    // Predicated region
    $region18: #{tpu_custom_call.1} parent=1 // pred_check
      _
    $region19: #{tpu_custom_call.1} parent=1 // pred_check_branch
      %59 = sbr.rel (0) target = $region21
    $region20: #{tpu_custom_call.1} parent=1 // pred_region
      %s61 = ssub.s32 16, 16
      %62 = vsyncadd [#allocation9], %s61
      %s64 = sshll.u32 [#allocation10], 4
      %s65 = int_to_ptr.vmem [resolvable:$true] %s64
      %67 = dma.hbm_to_vmem [thread:$0]  %s4, 16, %s65, [#allocation9]
    $region21: #{tpu_custom_call.1} parent=1 // pred_fallthru
      _
    // Predicated region
    $region22: #{tpu_custom_call.1} parent=1 // pred_check
      _
    $region23: #{tpu_custom_call.1} parent=1 // pred_check_branch
      %69 = sbr.rel (0) target = $region25
    $region24: #{tpu_custom_call.1} parent=1 // pred_region
      %70 = dma.done [#allocation3], 128
    $region25: #{tpu_custom_call.1} parent=1 // pred_fallthru
      _
    // Predicated region
    $region26: #{tpu_custom_call.1} parent=1 // pred_check
      _
    $region27: #{tpu_custom_call.1} parent=1 // pred_check_branch
      %72 = sbr.rel (0) target = $region29
    $region28: #{tpu_custom_call.1} parent=1 // pred_region
      %73 = dma.done [#allocation6], 16
    $region29: #{tpu_custom_call.1} parent=1 // pred_fallthru
      _
    // Predicated region
    $region30: #{tpu_custom_call.1} parent=1 // pred_check
      _
    $region31: #{tpu_custom_call.1} parent=1 // pred_check_branch
      %75 = sbr.rel (0) target = $region33
    $region32: #{tpu_custom_call.1} parent=1 // pred_region
      %76 = dma.done [#allocation6], 16
    $region33: #{tpu_custom_call.1} parent=1 // pred_fallthru
      _
    // Predicated region
    $region34: #{tpu_custom_call.1} parent=1 // pred_check
      _
    $region35: #{tpu_custom_call.1} parent=1 // pred_check_branch
      %78 = sbr.rel (0) target = $region37
    $region36: #{tpu_custom_call.1} parent=1 // pred_region
      %79 = dma.done [#allocation9], 256
    $region37: #{tpu_custom_call.1} parent=1 // pred_fallthru
      _
    // Predicated region
    $region38: #{tpu_custom_call.1} parent=1 // pred_check
      _
    $region39: #{tpu_custom_call.1} parent=1 // pred_check_branch
      %81 = sbr.rel (0) target = $region41
    $region40: #{tpu_custom_call.1} parent=1 // pred_region
      %82 = dma.done [#allocation9], 16
    $region41: #{tpu_custom_call.1} parent=1 // pred_fallthru
      _
    %v84 = vld [vmem:[#allocation2] sm:$0xf]
    %v85 = vld [vmem:[#allocation2 + $0x4] sm:$0xf]
    %v86 = vunpack.c.l.bf16 %v84
    %v87 = vunpack.c.l.bf16 %v85
    %vm88 = vcmask 261120
    %v89 = vsel %vm88, %v86, 0.0
    %90 = vadd.xlane.f32.xlu0 %v89
    %v91 = vpop.xlane.xlu0 %90
    %v92 = vsel %vm88, %v87, 0.0
    %93 = vadd.xlane.f32.xlu0 %v92
    %v94 = vpop.xlane.xlu0 %93
    %v95 = vrcp.pop 32.0
    %v96 = vmul.f32 %v91, %v95
    %v97 = vmul.f32 %v94, %v95
    %v98 = vsub.f32 %v86, %v96
    %v99 = vsub.f32 %v87, %v97
    %v100 = vmul.f32 %v98, %v98
    %v101 = vmul.f32 %v99, %v99
    %v102 = vsel %vm88, %v100, 0.0
    %103 = vadd.xlane.f32.xlu0 %v102
    %v104 = vpop.xlane.xlu0 %103
    %v105 = vsel %vm88, %v101, 0.0
    %106 = vadd.xlane.f32.xlu0 %v105
    %v107 = vpop.xlane.xlu0 %106
    %v108 = vmul.f32 %v104, %v95
    %v109 = vmul.f32 %v107, %v95
    %v110 = vadd.f32 %v108, 1e-05
    %v111 = vadd.f32 %v109, 1e-05
    %v112 = vrsqrt.pop %v110
    %v113 = vrsqrt.pop %v111
    %v114 = vmul.f32 %v98, %v112
    %v115 = vmul.f32 %v99, %v113
    %v116 = vld [vmem:[#allocation5] sm:$0x1]
    %v118 = vlaneseq
    %v119 = vshrl.u32 %v118, 7
    %v120 = vsub.s32 0, %v119
    %v121 = vrot.slane %v116, %v120
    %v123 = vmul.f32 %v114, %v121
    %v124 = vmul.f32 %v115, %v121
    %v125 = vld [vmem:[#allocation7] sm:$0x1]
    %v127 = vlaneseq
    %v128 = vshrl.u32 %v127, 7
    %v129 = vsub.s32 0, %v128
    %v130 = vrot.slane %v125, %v129
    %v132 = vadd.f32 %v123, %v130
    %v133 = vadd.f32 %v124, %v130
    %v134 = vpack.c.bf16 %v133, %v132
    %v135 = vld [vmem:[#allocation8] sm:$0xf]
    %v136 = vld [vmem:[#allocation8 + $0x4] sm:$0xf]
    %v137 = vld [vmem:[#allocation8 + $0x8] sm:$0xf]
    %v138 = vld [vmem:[#allocation8 + $0xc] sm:$0xf]
    %v139 = vld [vmem:[#allocation10] sm:$0x1]
    %v141 = vlaneseq
    %v142 = vshrl.u32 %v141, 7
    %v143 = vsub.s32 0, %v142
    %v144 = vrot.slane %v139, %v143
    %v150 = vunpack.c.l.b16 %v135
    %v151 = vunpack.c.l.b16 %v136
    %v152 = vunpack.c.l.b16 %v137
    %v153 = vunpack.c.l.b16 %v138
    %v154 = vpack.c.b16 %v151, %v150
    %v155 = vpack.c.b16 %v153, %v152
    %v159 = vsel %vm88, %v134, 0
    %161 = vmatprep.subr.bf16.mxu0 0
    %162 = vmatpush1.bf16.msra.mxu0 %v154
    %163 = vmatprep.subr.bf16.mxu0 0
    %164 = vmatpush1.bf16.msra.mxu0 %v155
    %165 = vmatprep.subr.bf16.mxu0 0
    %166 = vmatpush1.bf16.msra.mxu0 0
    %167 = vmatprep.subr.bf16.mxu0 0
    %168 = vmatpush1.bf16.msra.mxu0 0
    %169 = vmatprep.subr.bf16.mxu0 0
    %170 = vmatpush1.bf16.msra.mxu0 0
    %171 = vmatprep.subr.bf16.mxu0 0
    %172 = vmatpush1.bf16.msra.mxu0 0
    %173 = vmatprep.subr.bf16.mxu0 0
    %174 = vmatpush1.bf16.msra.mxu0 0
    %175 = vmatprep.subr.bf16.mxu0 0
    %176 = vmatpush1.bf16.msra.mxu0 0
    %177 = vmatprep.subr.bf16.mxu0 0
    %178 = vmatpush1.bf16.msra.mxu0 0
    %179 = vmatprep.subr.bf16.mxu0 0
    %180 = vmatpush1.bf16.msra.mxu0 0
    %181 = vmatprep.subr.bf16.mxu0 0
    %182 = vmatpush1.bf16.msra.mxu0 0
    %183 = vmatprep.subr.bf16.mxu0 0
    %184 = vmatpush1.bf16.msra.mxu0 0
    %185 = vmatprep.subr.bf16.mxu0 0
    %186 = vmatpush1.bf16.msra.mxu0 0
    %187 = vmatprep.subr.bf16.mxu0 0
    %188 = vmatpush1.bf16.msra.mxu0 0
    %189 = vmatprep.subr.bf16.mxu0 0
    %190 = vmatpush1.bf16.msra.mxu0 0
    %191 = vmatprep.subr.bf16.mxu0 0
    %192 = vmatpush1.bf16.msra.mxu0 0
    %193 = vmatprep.mubr.bf16.mxu0 0
    %194 = vmatmul.mubr.bf16.gmra.mrb[0].mxu0 %v159
    %v195 = vpop.f32.mrb[0].mxu0
    %v196 = vadd.f32 %v144, %v195
    %v197 = vpop.f32.mrb[0].mxu0
    %v198 = vpop.f32.mrb[0].mxu0
    %v199 = vadd.f32 %v144, %v198
    %v200 = vpop.f32.mrb[0].mxu0
    %201 = vdwg.mxu0
    %v202 = vmul.f32 %v196, %v196
    %v203 = vmul.f32 %v199, %v199
    %v204 = vmul.f32 %v196, %v202
    %v205 = vmul.f32 %v199, %v203
    %v206 = vmul.f32 %v204, 0.044715
    %v207 = vmul.f32 %v205, 0.044715
    %v208 = vadd.f32 %v196, %v206
    %v209 = vadd.f32 %v199, %v207
    %v210 = vmul.f32 %v208, 0.7978846
    %v211 = vmul.f32 %v209, 0.7978846
    %v212 = vtanh.pop %v210
    %v213 = vtanh.pop %v211
    %v214 = vadd.f32 %v212, 1.0
    %v215 = vadd.f32 %v213, 1.0
    %v216 = vmul.f32 %v214, 0.5
    %v217 = vmul.f32 %v215, 0.5
    %v218 = vmul.f32 %v196, %v216
    %v219 = vmul.f32 %v199, %v217
    %v220 = vpack.c.bf16 %v219, %v218
    %v222 = vunpack.c.l.b16 %v220
    %v223 = vunpack.c.h.b16 %v220
    %v224 = vpack.c.b16 %v222, %v222
    %v225 = vpack.c.b16 %v223, %v223
    %vm228 = vcmask 519168
    %229 = vst.msk [vmem:[#allocation11] sm:$0xf] %vm228, %v224
    %230 = vst.msk [vmem:[#allocation11 + $0x4] sm:$0xf] %vm228, %v225
    // Predicated region
    $region42: #{tpu_custom_call.1} parent=1 // pred_check
      _
    $region43: #{tpu_custom_call.1} parent=1 // pred_check_branch
      %232 = sbr.rel (0) target = $region45
    $region44: #{tpu_custom_call.1} parent=1 // pred_region
      %s234 = ssub.s32 128, 128
      %235 = vsyncadd [#allocation4], %s234
      %s236 = sshll.u32 [#allocation11], 4
      %s237 = int_to_ptr.vmem [resolvable:$true] %s236
      %242 = dma.vmem_to_hbm [thread:$0]  %s237, 128, %s5, [#allocation4], 64, 64, 4
    $region45: #{tpu_custom_call.1} parent=1 // pred_fallthru
      _
    // Predicated region
    $region46: #{tpu_custom_call.1} parent=1 // pred_check
      _
    $region47: #{tpu_custom_call.1} parent=1 // pred_check_branch
      %244 = sbr.rel (0) target = $region49
    $region48: #{tpu_custom_call.1} parent=1 // pred_region
      %245 = dma.done [#allocation4], 128
    $region49: #{tpu_custom_call.1} parent=1 // pred_fallthru
      _
    %246 = vsyncpa [#allocation3], 1
    %247 = vsyncpa [#allocation6], 1
    %248 = vsyncpa [#allocation9], 1
    %249 = vsyncpa [#allocation4], 1

</llo_original>
